<compile_context>
chip_gen: v5e
topology: v5e:2x2
jax: 0.10.0
libtpu: 0.0.40
codegen_flags: <defaults>
</compile_context>

<pallas_src>
import functools
import math

import jax
import jax.numpy as jnp
from jax import lax
from jax.experimental import pallas as pl
from jax.experimental.pallas import tpu as pltpu

F32 = jnp.float32
BF16 = jnp.bfloat16

_VMEM_LIMIT = 48 * 1024 * 1024  # <= v7x 64 MiB physical; plenty of headroom on v5e/v6e


def _mosaic(dims):
    return pltpu.CompilerParams(
        dimension_semantics=tuple(dims), vmem_limit_bytes=_VMEM_LIMIT
    )


def _row_tile(m, cap=256):
    # cap is a multiple of 8 (sublane); full dim allowed when m <= cap.
    return m if m <= cap else cap


def _col_tile(n, cap=512):
    # cap is a multiple of 128 (lane); full dim allowed when n <= cap.
    return n if n <= cap else cap


def _k_tile(k, cap=512):
    # only tile the contraction when it divides evenly (partial K blocks would
    # pollute the accumulator).
    return cap if (k > cap and k % cap == 0) else k


def _activate(y, act):
    if act == "silu":
        return y / (1.0 + jnp.exp(-y))           # y * sigmoid(y)
    if act == "gelu":
        # TODO(synk): torch nn.GELU is exact erf; tanh approx used for lowering.
        return jax.nn.gelu(y, approximate=True)
    if act == "softsign":
        return y / (1.0 + jnp.abs(y))
    return y


# ----------------------------------------------------------------------------
# Pallas kernels
# ----------------------------------------------------------------------------
def _linear_kernel(x_ref, w_ref, b_ref, o_ref, acc_ref, *, act):
    @pl.when(pl.program_id(2) == 0)
    def _():
        acc_ref[...] = jnp.zeros_like(acc_ref)

    acc_ref[...] += jnp.dot(x_ref[...], w_ref[...],
                            preferred_element_type=jnp.float32)

    @pl.when(pl.program_id(2) == pl.num_programs(2) - 1)
    def _():
        y = acc_ref[...] + b_ref[...]
        o_ref[...] = _activate(y, act).astype(o_ref.dtype)


def linear(x, w, b=None, act="none"):
    """y = act(x @ w + b), x: (..., K), w: (K, N). bf16 operands, f32 accumulate."""
    orig = x.shape
    K = orig[-1]
    N = w.shape[-1]
    x2 = x.reshape(-1, K)
    M = x2.shape[0]
    tm, tn, tk = _row_tile(M), _col_tile(N), _k_tile(K)
    b2 = (jnp.zeros((N,), F32) if b is None else b.astype(F32)).reshape(1, N)
    out = pl.pallas_call(
        functools.partial(_linear_kernel, act=act),
        out_shape=jax.ShapeDtypeStruct((M, N), F32),
        grid=(pl.cdiv(M, tm), pl.cdiv(N, tn), pl.cdiv(K, tk)),
        in_specs=[
            pl.BlockSpec((tm, tk), lambda i, j, k: (i, k)),
            pl.BlockSpec((tk, tn), lambda i, j, k: (k, j)),
            pl.BlockSpec((1, tn), lambda i, j, k: (0, j)),
        ],
        out_specs=pl.BlockSpec((tm, tn), lambda i, j, k: (i, j)),
        scratch_shapes=[pltpu.VMEM((tm, tn), jnp.float32)],
        compiler_params=_mosaic(("parallel", "parallel", "arbitrary")),
    )(x2.astype(BF16), w.astype(BF16), b2)
    return out.reshape(orig[:-1] + (N,))


def _layernorm_kernel(x_ref, g_ref, b_ref, o_ref, *, eps):
    x = x_ref[...].astype(jnp.float32)
    mu = jnp.mean(x, axis=-1, keepdims=True)
    xc = x - mu
    var = jnp.mean(xc * xc, axis=-1, keepdims=True)
    o_ref[...] = (xc * lax.rsqrt(var + eps) * g_ref[...] + b_ref[...]).astype(o_ref.dtype)


def layernorm(x, gamma=None, beta=None, eps=1e-5):
    """LayerNorm over the last dim (gamma/beta None -> elementwise_affine=False)."""
    orig = x.shape
    D = orig[-1]
    x2 = x.reshape(-1, D)
    M = x2.shape[0]
    tm = _row_tile(M)
    g = (jnp.ones((D,), F32) if gamma is None else gamma.astype(F32)).reshape(1, D)
    b = (jnp.zeros((D,), F32) if beta is None else beta.astype(F32)).reshape(1, D)
    out = pl.pallas_call(
        functools.partial(_layernorm_kernel, eps=eps),
        out_shape=jax.ShapeDtypeStruct((M, D), F32),
        grid=(pl.cdiv(M, tm),),
        in_specs=[
            pl.BlockSpec((tm, D), lambda i: (i, 0)),
            pl.BlockSpec((1, D), lambda i: (0, 0)),
            pl.BlockSpec((1, D), lambda i: (0, 0)),
        ],
        out_specs=pl.BlockSpec((tm, D), lambda i: (i, 0)),
        compiler_params=_mosaic(("parallel",)),
    )(x2.astype(F32), g, b)
    return out.reshape(orig)


def _mlp_kernel(x_ref, w1_ref, b1_ref, w2_ref, b2_ref, o_ref):
    h = jnp.dot(x_ref[...], w1_ref[...], preferred_element_type=jnp.float32)
    h = h + b1_ref[...]
    # TODO(synk): torch nn.GELU is exact erf; tanh approx used for lowering.
    h = jax.nn.gelu(h, approximate=True)
    y = jnp.dot(h.astype(w2_ref.dtype), w2_ref[...],
                preferred_element_type=jnp.float32) + b2_ref[...]
    o_ref[...] = y.astype(o_ref.dtype)


def mlp_fused(x, w1, b1, w2, b2):
    """fc1 + GELU + fc2 in one kernel; intermediate activation never leaves VMEM."""
    orig = x.shape
    K = orig[-1]
    Hm = w1.shape[-1]
    N = w2.shape[-1]
    x2 = x.reshape(-1, K)
    M = x2.shape[0]
    tm = _row_tile(M)
    out = pl.pallas_call(
        _mlp_kernel,
        out_shape=jax.ShapeDtypeStruct((M, N), F32),
        grid=(pl.cdiv(M, tm),),
        in_specs=[
            pl.BlockSpec((tm, K), lambda i: (i, 0)),
            pl.BlockSpec((K, Hm), lambda i: (0, 0)),
            pl.BlockSpec((1, Hm), lambda i: (0, 0)),
            pl.BlockSpec((Hm, N), lambda i: (0, 0)),
            pl.BlockSpec((1, N), lambda i: (0, 0)),
        ],
        out_specs=pl.BlockSpec((tm, N), lambda i: (i, 0)),
        compiler_params=_mosaic(("parallel",)),
    )(x2.astype(BF16), w1.astype(BF16), b1.astype(F32).reshape(1, Hm),
      w2.astype(BF16), b2.astype(F32).reshape(1, N))
    return out.reshape(orig[:-1] + (N,))


def _attention_kernel(x_ref, wqkv_ref, qg_ref, qb_ref, kg_ref, kb_ref,
                      wp_ref, bp_ref, bias_ref, o_ref, *, H, Dh, eps):
    x = x_ref[0]                                              # (N, D)  bf16
    N = x.shape[0]
    D = H * Dh
    qkv = jnp.dot(x, wqkv_ref[...], preferred_element_type=jnp.float32)   # (N, 3D) f32
    bias = bias_ref[0]                                        # (1, N) additive key mask
    wp = wp_ref[...]                                          # (D, D)  bf16
    scale = 1.0 / math.sqrt(Dh)

    def _ln(u, g, b):
        mu = jnp.mean(u, axis=-1, keepdims=True)
        uc = u - mu
        var = jnp.mean(uc * uc, axis=-1, keepdims=True)
        return uc * lax.rsqrt(var + eps) * g + b

    acc = jnp.zeros((N, D), jnp.float32)
    for h in range(H):                                        # static unroll over heads
        qh = _ln(qkv[:, h * Dh:(h + 1) * Dh], qg_ref[...], qb_ref[...]) * scale
        kh = _ln(qkv[:, D + h * Dh:D + (h + 1) * Dh], kg_ref[...], kb_ref[...])
        vh = qkv[:, 2 * D + h * Dh:2 * D + (h + 1) * Dh]
        s = lax.dot_general(qh.astype(BF16), kh.astype(BF16),
                            (((1,), (1,)), ((), ())),
                            preferred_element_type=jnp.float32)            # (N, N)
        s = s + bias
        m = jnp.max(s, axis=-1, keepdims=True)
        e = jnp.exp(s - m)
        p = e * pl.reciprocal(jnp.sum(e, axis=-1, keepdims=True), approx=True)
        oh = jnp.dot(p.astype(BF16), vh.astype(BF16),
                     preferred_element_type=jnp.float32)                   # (N, Dh)
        # fold the output projection per head: out += o_h @ Wp[h*Dh:(h+1)*Dh, :]
        acc = acc + jnp.dot(oh.astype(BF16), wp[h * Dh:(h + 1) * Dh, :],
                            preferred_element_type=jnp.float32)
    o_ref[0] = (acc + bp_ref[...]).astype(o_ref.dtype)


def attention_forward(p, cfg, x, node_mask):
    # TODO(synk): Attention source not provided; timm-style MHA with qkv_bias=False,
    # per-head q/k LayerNorm (qk_norm=True) and additive key-masking from node_mask.
    B, N, D = x.shape
    H = cfg["num_heads"]
    Dh = D // H
    bias = jnp.where(node_mask, 0.0, -1e9).astype(F32).reshape(B, 1, N)
    r2 = lambda v: v.astype(F32).reshape(1, Dh)
    return pl.pallas_call(
        functools.partial(_attention_kernel, H=H, Dh=Dh, eps=1e-5),
        out_shape=jax.ShapeDtypeStruct((B, N, D), F32),
        grid=(B,),
        in_specs=[
            pl.BlockSpec((1, N, D), lambda b: (b, 0, 0)),
            pl.BlockSpec((D, 3 * D), lambda b: (0, 0)),
            pl.BlockSpec((1, Dh), lambda b: (0, 0)),
            pl.BlockSpec((1, Dh), lambda b: (0, 0)),
            pl.BlockSpec((1, Dh), lambda b: (0, 0)),
            pl.BlockSpec((1, Dh), lambda b: (0, 0)),
            pl.BlockSpec((D, D), lambda b: (0, 0)),
            pl.BlockSpec((1, D), lambda b: (0, 0)),
            pl.BlockSpec((1, 1, N), lambda b: (b, 0, 0)),
        ],
        out_specs=pl.BlockSpec((1, N, D), lambda b: (b, 0, 0)),
        compiler_params=_mosaic(("parallel",)),
    )(x.astype(BF16), p["qkv_w"].astype(BF16),
      r2(p["q_g"]), r2(p["q_b"]), r2(p["k_g"]), r2(p["k_b"]),
      p["proj_w"].astype(BF16), p["proj_b"].astype(F32).reshape(1, D), bias)


def _ln_mod_res_kernel(x_ref, h_ref, mod_ref, o_ref, *, eps, base):
    h = h_ref[...]                                            # (1, tn, D)
    mu = jnp.mean(h, axis=-1, keepdims=True)
    hc = h - mu
    var = jnp.mean(hc * hc, axis=-1, keepdims=True)
    hn = hc * lax.rsqrt(var + eps)
    m = mod_ref[0]                                            # (6, D)
    shift = m[base:base + 1, :]
    scale = m[base + 1:base + 2, :]
    gate = m[base + 2:base + 3, :]
    o_ref[...] = (x_ref[...] + gate * (hn * (1.0 + scale) + shift)).astype(o_ref.dtype)


def ln_modulate_residual(x, h, mod6, base, eps=1e-5):
    """x + gate * modulate(LayerNorm_no_affine(h), shift, scale); adaLN rows [base:base+3]."""
    B, N, D = x.shape
    tn = _row_tile(N)
    return pl.pallas_call(
        functools.partial(_ln_mod_res_kernel, eps=eps, base=base),
        out_shape=jax.ShapeDtypeStruct((B, N, D), F32),
        grid=(B, pl.cdiv(N, tn)),
        in_specs=[
            pl.BlockSpec((1, tn, D), lambda b, j: (b, j, 0)),
            pl.BlockSpec((1, tn, D), lambda b, j: (b, j, 0)),
            pl.BlockSpec((1, 6, D), lambda b, j: (b, 0, 0)),
        ],
        out_specs=pl.BlockSpec((1, tn, D), lambda b, j: (b, j, 0)),
        compiler_params=_mosaic(("parallel", "parallel")),
    )(x.astype(F32), h.astype(F32), mod6.astype(F32))


def _ln_mod_kernel(h_ref, mod_ref, o_ref, *, eps):
    h = h_ref[...]
    mu = jnp.mean(h, axis=-1, keepdims=True)
    hc = h - mu
    var = jnp.mean(hc * hc, axis=-1, keepdims=True)
    hn = hc * lax.rsqrt(var + eps)
    m = mod_ref[0]                                            # (2, D)
    shift = m[0:1, :]
    scale = m[1:2, :]
    o_ref[...] = (hn * (1.0 + scale) + shift).astype(o_ref.dtype)


def ln_modulate(h, mod2, eps=1e-5):
    """modulate(LayerNorm_no_affine(h), shift, scale) for the output layer."""
    B, N, D = h.shape
    tn = _row_tile(N)
    return pl.pallas_call(
        functools.partial(_ln_mod_kernel, eps=eps),
        out_shape=jax.ShapeDtypeStruct((B, N, D), F32),
        grid=(B, pl.cdiv(N, tn)),
        in_specs=[
            pl.BlockSpec((1, tn, D), lambda b, j: (b, j, 0)),
            pl.BlockSpec((1, 2, D), lambda b, j: (b, 0, 0)),
        ],
        out_specs=pl.BlockSpec((1, tn, D), lambda b, j: (b, j, 0)),
        compiler_params=_mosaic(("parallel", "parallel")),
    )(h.astype(F32), mod2.astype(F32))


# ----------------------------------------------------------------------------
# Model pieces (JAX glue composing the Pallas kernels)
# ----------------------------------------------------------------------------
def timestep_embedding(t, dim, max_period=10000.0):
    # TODO(synk): TimestepEmbedder source not provided; standard DiT sinusoidal
    # features + 2-layer SiLU MLP are used.
    half = dim // 2
    freqs = jnp.exp(-math.log(max_period) * jnp.arange(half, dtype=F32) / half)
    args = t.astype(F32)[:, None] * freqs[None, :]
    return jnp.concatenate([jnp.cos(args), jnp.sin(args)], axis=-1)


def block_forward(p, cfg, x, c, node_mask):
    # adaLN: Linear -> SiLU -> Linear -> Softsign, used as one (B, 6, D) tensor
    h1 = linear(c, p["ada_w1"], p["ada_b1"], act="silu")
    mod = linear(h1, p["ada_w2"], p["ada_b2"], act="softsign")     # (B, 6D)
    B = mod.shape[0]
    D = x.shape[-1]
    mod6 = mod.reshape(B, 6, D)

    attn_out = attention_forward(p["attn"], cfg, x, node_mask)     # fused MHA kernel
    x = ln_modulate_residual(x, attn_out, mod6, base=0)            # attn_norm + modulate + gate

    mlp_out = mlp_fused(x, p["mlp_w1"], p["mlp_b1"], p["mlp_w2"], p["mlp_b2"])
    x = ln_modulate_residual(x, mlp_out, mod6, base=3)             # mlp_norm + modulate + gate
    return x


def output_layer_forward(p, cfg, x, x_in, e_in, c, node_mask):
    B, N, _ = x.shape
    atom_type, bond_type = cfg["Xdim"], cfg["Edim"]

    # xedecoder = MLP(hidden -> hidden -> final_size)
    x_all = mlp_fused(x, p["dec_w1"], p["dec_b1"], p["dec_w2"], p["dec_b2"])   # (B,N,final)
    Fdim = x_all.shape[-1]

    ada_h = linear(c, p["ada_w1"], p["ada_b1"], act="silu")
    mod = linear(ada_h, p["ada_w2"], p["ada_b2"])                  # (B, 2*final)
    mod2 = mod.reshape(B, 2, Fdim)

    x_all = ln_modulate(x_all, mod2)                               # norm_final + modulate

    atom_out = x_in + x_all[:, :, :atom_type]
    bond_out = e_in + x_all[:, :, atom_type:].reshape(B, N, N, bond_type)

    nm = node_mask
    edge_mask = (~nm)[:, :, None] & (~nm)[:, None, :]              # matches torch reference (AND)
    diag_mask = jnp.eye(N, dtype=bool)[None, :, :]
    kill = edge_mask | diag_mask
    bond_out = jnp.where(kill[:, :, :, None], 0.0, bond_out)
    bond_out = 0.5 * (bond_out + jnp.swapaxes(bond_out, 1, 2))
    return atom_out, bond_out


def transformer_forward(params, cfg, X_in, E_in, node_mask, y_in, txt, t, unconditioned):
    bs, n, _ = X_in.shape
    X = jnp.concatenate([X_in, E_in.reshape(bs, n, -1)], axis=-1)
    X = linear(X, params["x_emb"]["w"])                            # bias=False
    X = layernorm(X, params["x_emb"]["ln_g"], params["x_emb"]["ln_b"])

    # c = t_embedder(t) + y_embedder(y) + txt_embedder(txt)
    temb = timestep_embedding(t, cfg["freq_dim"])
    c1 = linear(temb, params["t_emb"]["w1"], params["t_emb"]["b1"], act="silu")
    c1 = linear(c1, params["t_emb"]["w2"], params["t_emb"]["b2"])

    # TODO(synk): ConditionEmbedder / TextEmbedder sources not provided; a
    # 2-layer SiLU MLP with condition zeroed when `unconditioned` is used.
    y = jnp.where(unconditioned, jnp.zeros_like(y_in), y_in)
    c2 = linear(y, params["y_emb"]["w1"], params["y_emb"]["b1"], act="silu")
    c2 = linear(c2, params["y_emb"]["w2"], params["y_emb"]["b2"])

    tx = jnp.where(unconditioned, jnp.zeros_like(txt), txt)
    c3 = linear(tx, params["txt_emb"]["w1"], params["txt_emb"]["b1"], act="silu")
    c3 = linear(c3, params["txt_emb"]["w2"], params["txt_emb"]["b2"])

    c = c1 + c2 + c3

    for bp in params["blocks"]:
        X = block_forward(bp, cfg, X, c, node_mask)

    atom_out, bond_out = output_layer_forward(params["out"], cfg, X, X_in, E_in, c, node_mask)

    # PlaceHolder(X, E, y=None).mask(node_mask)
    xm = node_mask.astype(F32)
    atom_out = atom_out * xm[:, :, None]
    bond_out = bond_out * xm[:, :, None, None] * xm[:, None, :, None]
    return atom_out, bond_out


# ----------------------------------------------------------------------------
# Deterministic parameter init (xavier-uniform weights, zero biases).
# NOTE: the torch module zero-inits the first adaLN linear, which would make
# every block an identity map at init; small random weights are used instead so
# the kernels are actually exercised.
# ----------------------------------------------------------------------------
def init_params(key, cfg):
    H = cfg["hidden"]
    heads = cfg["num_heads"]
    Dh = H // heads
    mlp_h = int(H * cfg["mlp_ratio"])
    in_dim = cfg["Xdim"] + cfg["max_n_nodes"] * cfg["Edim"]
    final = cfg["Xdim"] + cfg["max_n_nodes"] * cfg["Edim"]

    keys = iter(jax.random.split(key, 128))

    def lin(fi, fo):
        lim = math.sqrt(6.0 / (fi + fo))
        return jax.random.uniform(next(keys), (fi, fo), F32, -lim, lim)

    zeros = lambda d: jnp.zeros((d,), F32)
    ones = lambda d: jnp.ones((d,), F32)

    params = {
        "x_emb": {"w": lin(in_dim, H), "ln_g": ones(H), "ln_b": zeros(H)},
        "t_emb": {"w1": lin(cfg["freq_dim"], H), "b1": zeros(H), "w2": lin(H, H), "b2": zeros(H)},
        "y_emb": {"w1": lin(cfg["ydim"], H), "b1": zeros(H), "w2": lin(H, H), "b2": zeros(H)},
        "txt_emb": {"w1": lin(cfg["text_dim"], H), "b1": zeros(H), "w2": lin(H, H), "b2": zeros(H)},
        "blocks": [],
    }
    for _ in range(cfg["depth"]):
        params["blocks"].append(
            {
                "attn": {
                    "qkv_w": lin(H, 3 * H),
                    "q_g": ones(Dh), "q_b": zeros(Dh),
                    "k_g": ones(Dh), "k_b": zeros(Dh),
                    "proj_w": lin(H, H), "proj_b": zeros(H),
                },
                "mlp_w1": lin(H, mlp_h), "mlp_b1": zeros(mlp_h),
                "mlp_w2": lin(mlp_h, H), "mlp_b2": zeros(H),
                "ada_w1": lin(H, H), "ada_b1": zeros(H),
                "ada_w2": lin(H, 6 * H), "ada_b2": zeros(6 * H),
            }
        )
    params["out"] = {
        "dec_w1": lin(H, H), "dec_b1": zeros(H),
        "dec_w2": lin(H, final), "dec_b2": zeros(final),
        "ada_w1": lin(H, H), "ada_b1": zeros(H),
        "ada_w2": lin(H, 2 * final), "ada_b2": zeros(2 * final),
    }
    return params


# ----------------------------------------------------------------------------
if __name__ == "__main__":
    cfg = dict(
        max_n_nodes=8, hidden=32, depth=2, num_heads=4, mlp_ratio=4.0,
        Xdim=4, Edim=2, ydim=4, text_dim=16, freq_dim=32,
    )
    key = jax.random.PRNGKey(0)
    pkey, dkey = jax.random.split(key)
    params = init_params(pkey, cfg)

    B, N = 2, cfg["max_n_nodes"]
    ks = jax.random.split(dkey, 6)
    X_in = jax.random.normal(ks[0], (B, N, cfg["Xdim"]), F32)
    E_in = jax.random.normal(ks[1], (B, N, N, cfg["Edim"]), F32)
    E_in = 0.5 * (E_in + jnp.swapaxes(E_in, 1, 2))               # symmetric edges
    node_mask = jnp.arange(N)[None, :] < jnp.array([N, N - 2])[:, None]
    y_in = jax.random.normal(ks[2], (B, cfg["ydim"]), F32)
    txt = jax.random.normal(ks[3], (B, cfg["text_dim"]), F32)
    t = jax.random.uniform(ks[4], (B,), F32) * 1000.0

    atom_out, bond_out = transformer_forward(
        params, cfg, X_in, E_in, node_mask, y_in, txt, t, unconditioned=False
    )
    jax.block_until_ready((atom_out, bond_out))
    assert atom_out.shape == (B, N, cfg["Xdim"])
    assert bond_out.shape == (B, N, N, cfg["Edim"])
    print("KERNEL_OK")
</pallas_src>

<mosaic_0001>
module attributes {stable_mosaic.version = 11 : i64} {
  func.func @_linear_kernel(%arg0: i32, %arg1: i32, %arg2: i32, %arg3: memref<16x20xbf16, #tpu.memory_space<vmem>>, %arg4: memref<20x32xbf16, #tpu.memory_space<vmem>>, %arg5: memref<1x32xf32, #tpu.memory_space<vmem>>, %arg6: memref<16x32xf32, #tpu.memory_space<vmem>>, %arg7: memref<16x32xf32, #tpu.memory_space<vmem>>) attributes {dimension_semantics = [#tpu.dimension_semantics<parallel>, #tpu.dimension_semantics<parallel>, #tpu.dimension_semantics<arbitrary>], iteration_bounds = array<i64: 1, 1, 1>, scalar_prefetch = 0 : i64, scratch_operands = 1 : i64, tpu.core_type = #tpu.core_type<tc>, window_params = [{transform_indices = @transform_0, window_bounds = array<i64: 16, 20>}, {transform_indices = @transform_1, window_bounds = array<i64: 20, 32>}, {transform_indices = @transform_2, window_bounds = array<i64: 1, 32>}, {transform_indices = @transform_3, window_bounds = array<i64: 16, 32>}]} {
    %c0_i32 = arith.constant 0 : i32
    %0 = arith.cmpi eq, %arg2, %c0_i32 : i32
    %1 = arith.extui %0 : i1 to i32
    %c0_i32_0 = arith.constant 0 : i32
    %2 = arith.cmpi ne, %1, %c0_i32_0 : i32
    scf.if %2 {
      %cst_10 = arith.constant 0.000000e+00 : f32
      %12 = vector.broadcast %cst_10 : f32 to vector<16x32xf32>
      %c0_11 = arith.constant 0 : index
      %c0_12 = arith.constant 0 : index
      %13 = vector.load %arg7[%c0_11, %c0_12] : memref<16x32xf32, #tpu.memory_space<vmem>>, vector<16x32xf32>
      tpu.vector_store %arg7[%c0_11, %c0_12], %12 {strides = array<i32>} : memref<16x32xf32, #tpu.memory_space<vmem>>, vector<16x32xf32>,
    } else {
    }
    %c0 = arith.constant 0 : index
    %c0_1 = arith.constant 0 : index
    %3 = vector.load %arg7[%c0, %c0_1] : memref<16x32xf32, #tpu.memory_space<vmem>>, vector<16x32xf32>
    %c0_2 = arith.constant 0 : index
    %c0_3 = arith.constant 0 : index
    %4 = vector.load %arg3[%c0_2, %c0_3] : memref<16x20xbf16, #tpu.memory_space<vmem>>, vector<16x20xbf16>
    %c0_4 = arith.constant 0 : index
    %c0_5 = arith.constant 0 : index
    %5 = vector.load %arg4[%c0_4, %c0_5] : memref<20x32xbf16, #tpu.memory_space<vmem>>, vector<20x32xbf16>
    %cst = arith.constant dense<0.000000e+00> : vector<16x32xf32>
    %6 = tpu.matmul %4, %5, %cst {dimension_numbers = #tpu.dot_dimension_numbers<[1], [0], [0], [1], [0, 0, 1, 1], [], []>} : vector<16x20xbf16>, vector<20x32xbf16>, vector<16x32xf32> -> vector<16x32xf32>
    %7 = arith.addf %3, %6 : vector<16x32xf32>
    %c0_6 = arith.constant 0 : index
    %c0_7 = arith.constant 0 : index
    %8 = vector.load %arg7[%c0_6, %c0_7] : memref<16x32xf32, #tpu.memory_space<vmem>>, vector<16x32xf32>
    tpu.vector_store %arg7[%c0_6, %c0_7], %7 {strides = array<i32>} : memref<16x32xf32, #tpu.memory_space<vmem>>, vector<16x32xf32>,
    %c0_i32_8 = arith.constant 0 : i32
    %9 = arith.cmpi eq, %arg2, %c0_i32_8 : i32
    %10 = arith.extui %9 : i1 to i32
    %c0_i32_9 = arith.constant 0 : i32
    %11 = arith.cmpi ne, %10, %c0_i32_9 : i32
    scf.if %11 {
      %c0_10 = arith.constant 0 : index
      %c0_11 = arith.constant 0 : index
      %12 = vector.load %arg7[%c0_10, %c0_11] : memref<16x32xf32, #tpu.memory_space<vmem>>, vector<16x32xf32>
      %c0_12 = arith.constant 0 : index
      %c0_13 = arith.constant 0 : index
      %13 = vector.load %arg5[%c0_12, %c0_13] : memref<1x32xf32, #tpu.memory_space<vmem>>, vector<1x32xf32>
      %14 = vector.broadcast %13 : vector<1x32xf32> to vector<16x32xf32>
      %15 = arith.addf %12, %14 : vector<16x32xf32>
      %c0_14 = arith.constant 0 : index
      %c0_15 = arith.constant 0 : index
      %16 = vector.load %arg6[%c0_14, %c0_15] : memref<16x32xf32, #tpu.memory_space<vmem>>, vector<16x32xf32>
      tpu.vector_store %arg6[%c0_14, %c0_15], %15 {strides = array<i32>} : memref<16x32xf32, #tpu.memory_space<vmem>>, vector<16x32xf32>,
    } else {
    }
    return
  }
  func.func @transform_0(%arg0: i32, %arg1: i32, %arg2: i32) -> (i32, i32) {
    %c0_i32 = arith.constant 0 : i32
    return %arg0, %arg2 : i32, i32
  }
  func.func @transform_1(%arg0: i32, %arg1: i32, %arg2: i32) -> (i32, i32) {
    %c0_i32 = arith.constant 0 : i32
    return %arg2, %arg1 : i32, i32
  }
  func.func @transform_2(%arg0: i32, %arg1: i32, %arg2: i32) -> (i32, i32) {
    %c0_i32 = arith.constant 0 : i32
    %c0_i32_0 = arith.constant 0 : i32
    return %c0_i32, %arg1 : i32, i32
  }
  func.func @transform_3(%arg0: i32, %arg1: i32, %arg2: i32) -> (i32, i32) {
    %c0_i32 = arith.constant 0 : i32
    return %arg0, %arg1 : i32, i32
  }
}

</mosaic_0001>

<llo_original>
// kernel: tpu_custom_call.1
$region0: #{tpu_custom_call.1}
  #allocation0 [shape = 'u32[]', space=smem, size = 0x4, offset = 0x4, fixed_abs, tag = 'smem constant byte address 0x4 - core index']
  #allocation1 [shape = 'u32[72,128]{1,0:T(1,128)}', space=vmem, size = 0x9000, scoped, tag = 'internal scratch']
  #allocation2 [shape = 'f32[16,32]{1,0:T(8,128)}', space=vmem, size = 0x2000, scoped, tag = 'scratch operand']
  %s0 = inlined_call_operand.hbm [shape: bf16[16,20], index: 0, kind: input, shape index: {}]
  %s1 = inlined_call_operand.hbm [shape: bf16[20,32], index: 1, kind: input, shape index: {}]
  %s2 = inlined_call_operand.vmem [shape: f32[1,32], index: 2, kind: input, shape index: {}]
  %s3 = inlined_call_operand.hbm [shape: f32[16,32], index: 3, kind: output, shape index: {}]
  %s4 = sld [smem:[#allocation0]]
  $region38: #{tpu_custom_call.1} parent=0
    _
  %s6 = ssub.s32 1, %s4
  %s7 = scalar_select 0, %s6, %s4
  $region1: #{tpu_custom_call.1} parent=0
    #allocation3 [shape = 'u8[4096]{0}', space=vmem, size = 0x1000, scoped, tag = 'input window, operand 0, single buffered']
    #allocation4 [shape = 's32[1]{0}', space=sflag, size = 0x4, scoped, tag = 'scoped memory for tpu_custom_call.1']
    #allocation5 [shape = 's32[1]{0}', space=sflag, size = 0x4, scoped, tag = 'scoped memory for tpu_custom_call.1']
    #allocation6 [shape = 'u8[6144]{0}', space=vmem, size = 0x1800, scoped, tag = 'input window, operand 1, single buffered']
    #allocation7 [shape = 's32[1]{0}', space=sflag, size = 0x4, scoped, tag = 'scoped memory for tpu_custom_call.1']
    #allocation8 [shape = 'u8[8192]{0}', space=vmem, size = 0x2000, scoped, tag = 'output window, operand 0, single buffered']
    %8 = vsyncpa [#allocation4], 0
    %9 = vsyncpa [#allocation7], 0
    %10 = vsyncpa [#allocation5], 0
    // Predicated region
    $region2: #{tpu_custom_call.1} parent=1 // pred_check
      _
    $region3: #{tpu_custom_call.1} parent=1 // pred_check_branch
      %12 = sbr.rel (0) target = $region5
    $region4: #{tpu_custom_call.1} parent=1 // pred_region
      %14 = vsyncadd [#allocation4], 0
      %s15 = sshll.u32 %s0, 4
      %s16 = int_to_ptr.hbm [resolvable:$true] %s15
      %s17 = sshll.u32 [#allocation3], 4
      %s18 = int_to_ptr.vmem [resolvable:$true] %s17
      %23 = dma.hbm_to_vmem [thread:$0]  %s16, 128, %s18, [#allocation4], 64, 64, 4
    $region5: #{tpu_custom_call.1} parent=1 // pred_fallthru
      _
    // Predicated region
    $region6: #{tpu_custom_call.1} parent=1 // pred_check
      _
    $region7: #{tpu_custom_call.1} parent=1 // pred_check_branch
      %25 = sbr.rel (0) target = $region9
    $region8: #{tpu_custom_call.1} parent=1 // pred_region
      %27 = vsyncadd [#allocation7], 0
      %s28 = sshll.u32 %s1, 4
      %s29 = int_to_ptr.hbm [resolvable:$true] %s28
      %s30 = sshll.u32 [#allocation6], 4
      %s31 = int_to_ptr.vmem [resolvable:$true] %s30
      %36 = dma.hbm_to_vmem [thread:$0]  %s29, 192, %s31, [#allocation7], 64, 64, 4
    $region9: #{tpu_custom_call.1} parent=1 // pred_fallthru
      _
    // Predicated region
    $region10: #{tpu_custom_call.1} parent=1 // pred_check
      _
    $region11: #{tpu_custom_call.1} parent=1 // pred_check_branch
      %38 = sbr.rel (0) target = $region13
    $region12: #{tpu_custom_call.1} parent=1 // pred_region
      _
    $region13: #{tpu_custom_call.1} parent=1 // pred_fallthru
      _
    // Predicated region
    $region14: #{tpu_custom_call.1} parent=1 // pred_check
      _
    $region15: #{tpu_custom_call.1} parent=1 // pred_check_branch
      %40 = sbr.rel (0) target = $region17
    $region16: #{tpu_custom_call.1} parent=1 // pred_region
      %42 = dma.done [#allocation4], 128
    $region17: #{tpu_custom_call.1} parent=1 // pred_fallthru
      _
    // Predicated region
    $region18: #{tpu_custom_call.1} parent=1 // pred_check
      _
    $region19: #{tpu_custom_call.1} parent=1 // pred_check_branch
      %44 = sbr.rel (0) target = $region21
    $region20: #{tpu_custom_call.1} parent=1 // pred_region
      %46 = dma.done [#allocation7], 192
    $region21: #{tpu_custom_call.1} parent=1 // pred_fallthru
      _
    %p48 = scmp.eq.s32.totalorder 0, 0
    // Predicated region
    $region22: #{tpu_custom_call.1} parent=1 // pred_check
      %p49 = pneg %p48
    $region23: #{tpu_custom_call.1} parent=1 // pred_check_branch
      %51 = sbr.rel (%p49) target = $region25
    $region24: #{tpu_custom_call.1} parent=1 // pred_region
      %vm52 = vcmask 261120
      %53 = vst.msk [vmem:[#allocation2] sm:$0xff] %vm52, 0.0
      %54 = vst.msk [vmem:[#allocation2 + $0x8] sm:$0xff] %vm52, 0.0
    $region25: #{tpu_custom_call.1} parent=1 // pred_fallthru
      _
    %v55 = vld [vmem:[#allocation2] sm:$0xff]
    %v56 = vld [vmem:[#allocation2 + $0x8] sm:$0xff]
    %v57 = vld [vmem:[#allocation3] sm:$0xf]
    %v58 = vld [vmem:[#allocation3 + $0x4] sm:$0xf]
    %v59 = vld [vmem:[#allocation6] sm:$0xf]
    %v60 = vld [vmem:[#allocation6 + $0x4] sm:$0xf]
    %v61 = vld [vmem:[#allocation6 + $0x8] sm:$0x3]
    %v64 = vunpack.c.l.b16 %v57
    %v65 = vunpack.c.l.b16 %v58
    %v66 = vpack.c.b16 %v65, %v64
    %v70 = vunpack.c.l.b16 %v59
    %v71 = vunpack.c.l.b16 %v60
    %v72 = vunpack.c.l.b16 %v61
    %v73 = vpack.c.b16 %v71, %v70
    %v74 = vpack.c.b16 %v72, %v72
    %vm76 = vcmask 162816
    %v78 = vsel %vm76, %v66, 0
    %vm80 = vcmask 1041408
    %v82 = vsel %vm80, %v74, 0
    %84 = vmatpush.bf16.msra.mxu0 0
    %85 = vmatpush.bf16.msra.mxu0 0
    %86 = vmatpush.bf16.msra.mxu0 0
    %87 = vmatpush.bf16.msra.mxu0 0
    %88 = vmatpush.bf16.msra.mxu0 0
    %89 = vmatpush.bf16.msra.mxu0 0
    %90 = vmatpush.bf16.msra.mxu0 %v82
    %91 = vmatpush.bf16.msra.mxu0 %v73
    %92 = vmatmul.bf16.gmra.mxu0 %v78
    %v93 = vpop.f32.mrf.mxu0
    %v94 = vadd.f32 0.0, %v93
    %v95 = vpop.f32.mrf.mxu0
    %v96 = vadd.f32 0.0, %v95
    %97 = vdwg.mxu0
    %v98 = vadd.f32 %v55, %v94
    %v99 = vadd.f32 %v56, %v96
    %vm100 = vcmask 261120
    %101 = vst.msk [vmem:[#allocation2] sm:$0xff] %vm100, %v98
    %102 = vst.msk [vmem:[#allocation2 + $0x8] sm:$0xff] %vm100, %v99
    // Predicated region
    $region26: #{tpu_custom_call.1} parent=1 // pred_check
      %p103 = pneg %p48
    $region27: #{tpu_custom_call.1} parent=1 // pred_check_branch
      %105 = sbr.rel (%p103) target = $region29
    $region28: #{tpu_custom_call.1} parent=1 // pred_region
      %v106 = vld [vmem:[#allocation2] sm:$0xff]
      %v107 = vld [vmem:[#allocation2 + $0x8] sm:$0xff]
      %v108 = vld [vmem:[%s2] sm:$0x1]
      %v110 = vperm.slane %v108, 0
      %v112 = vadd.f32 %v106, %v110
      %v113 = vadd.f32 %v107, %v110
      %114 = vst.msk [vmem:[#allocation8] sm:$0xff] %vm100, %v112
      %115 = vst.msk [vmem:[#allocation8 + $0x8] sm:$0xff] %vm100, %v113
    $region29: #{tpu_custom_call.1} parent=1 // pred_fallthru
      _
    // Predicated region
    $region30: #{tpu_custom_call.1} parent=1 // pred_check
      _
    $region31: #{tpu_custom_call.1} parent=1 // pred_check_branch
      %117 = sbr.rel (0) target = $region33
    $region32: #{tpu_custom_call.1} parent=1 // pred_region
      %119 = vsyncadd [#allocation5], 0
      %s120 = sshll.u32 [#allocation8], 4
      %s121 = int_to_ptr.vmem [resolvable:$true] %s120
      %s122 = sshll.u32 %s3, 4
      %s123 = int_to_ptr.hbm [resolvable:$true] %s122
      %128 = dma.vmem_to_hbm [thread:$0]  %s121, 256, %s123, [#allocation5], 128, 128, 8
    $region33: #{tpu_custom_call.1} parent=1 // pred_fallthru
      _
    // Predicated region
    $region34: #{tpu_custom_call.1} parent=1 // pred_check
      _
    $region35: #{tpu_custom_call.1} parent=1 // pred_check_branch
      %130 = sbr.rel (0) target = $region37
    $region36: #{tpu_custom_call.1} parent=1 // pred_region
      %132 = dma.done [#allocation5], 256
    $region37: #{tpu_custom_call.1} parent=1 // pred_fallthru
      _
    %133 = vsyncpa [#allocation4], 1
    %134 = vsyncpa [#allocation7], 1
    %135 = vsyncpa [#allocation5], 1

</llo_original>
